<compile_context>
chip_gen: v5e
topology: v5e:2x2
jax: 0.10.0
libtpu: 0.0.40
codegen_flags: <defaults>
</compile_context>

<pallas_src>
import jax
import jax.numpy as jnp
from jax.experimental import pallas as pl
from jax.experimental.pallas import tpu as pltpu


# ---------------------------------------------------------------------------
# sizes
# ---------------------------------------------------------------------------
B = 2       # patients (batch)
C = 16      # cells per patient
G = 64      # genes
D = 32      # hidden / embedding dim
T = 2       # number of prediction tasks
K = 4       # classes per task (softmax over this)
BC = B * C
KPAD = 128  # lane-padded width for the task-0 predictor / output slab
LN_EPS = 1e-5


# ---------------------------------------------------------------------------
# packed-parameter layout (lane offsets; no segment crosses a 128-lane tile)
# ---------------------------------------------------------------------------
def _segments(spec):
    offs, o = {}, 0
    for name, sz in spec:
        offs[name] = (o, sz)
        o += sz
    return offs, o


WD_SEGS, WD_LANES = _segments([
    ("wpr", KPAD), ("wf1", 2 * D), ("w2", D), ("wq", D), ("wk", D),
    ("wv", D), ("wo", D), ("wp1", D), ("wp2", D)])                 # (D, 416)
BV_SEGS, BV_LANES = _segments([
    ("bpr", KPAD), ("bf1", 2 * D), ("b1", D), ("b2", D), ("bf2", D),
    ("ln1g", D), ("ln1b", D), ("ln2g", D), ("ln2b", D),
    ("bp1", D), ("bp2", D)])                                        # (1, 480)


def _ln(h, g, b):
    mu = jnp.mean(h, axis=-1, keepdims=True)
    var = jnp.mean((h - mu) ** 2, axis=-1, keepdims=True)
    return (h - mu) * jax.lax.rsqrt(var + LN_EPS) * g + b


# ---------------------------------------------------------------------------
# Pallas kernel: full forward for the whole batch in one grid step
# ---------------------------------------------------------------------------
def forward_kernel(x_ref, abias_ref, poolw_ref, wa_ref, wd_ref, bv_ref, out_ref):
    def wseg(name):
        o, sz = WD_SEGS[name]
        return wd_ref[:, o:o + sz]

    def bseg(name):
        o, sz = BV_SEGS[name]
        return bv_ref[:, o:o + sz]

    x = x_ref[...]                              # (B*C, G)
    w1 = wa_ref[:, 0:D]                         # (G, D)
    wf2 = wa_ref[:, D:2 * D]                    # (2D, D)

    # ---- gene2cell_encoder: per-cell MLP (all B*C rows at once) ----------
    h = jnp.maximum(
        jnp.dot(x, w1, preferred_element_type=jnp.float32) + bseg("b1"), 0.0)
    cell = jnp.dot(h, wseg("w2"), preferred_element_type=jnp.float32) + bseg("b2")

    # ---- cell2cell_encoder: single-head self-attn (block-diag mask) ------
    q = jnp.dot(cell, wseg("wq"), preferred_element_type=jnp.float32)
    k = jnp.dot(cell, wseg("wk"), preferred_element_type=jnp.float32)
    v = jnp.dot(cell, wseg("wv"), preferred_element_type=jnp.float32)

    scale = 1.0 / jnp.sqrt(jnp.float32(D))
    scores = jax.lax.dot_general(
        q, k, (((1,), (1,)), ((), ())),
        preferred_element_type=jnp.float32) * scale                 # (BC, BC)
    scores = scores + abias_ref[...]            # same-patient + key-padding bias
    scores = scores - jnp.max(scores, axis=-1, keepdims=True)
    p_attn = jnp.exp(scores)
    p_attn = p_attn * pl.reciprocal(
        jnp.sum(p_attn, axis=-1, keepdims=True), approx=True)
    attn = jnp.dot(p_attn, v, preferred_element_type=jnp.float32)
    attn = jnp.dot(attn, wseg("wo"), preferred_element_type=jnp.float32)

    h1 = _ln(cell + attn, bseg("ln1g"), bseg("ln1b"))

    ff = jnp.maximum(
        jnp.dot(h1, wseg("wf1"), preferred_element_type=jnp.float32) + bseg("bf1"),
        0.0)
    ff = jnp.dot(ff, wf2, preferred_element_type=jnp.float32) + bseg("bf2")
    h2 = _ln(h1 + ff, bseg("ln2g"), bseg("ln2b"))                    # (BC, D)

    # ---- cell2patient_aggregation: masked mean as a single matmul --------
    pooled = jnp.dot(poolw_ref[...], h2, preferred_element_type=jnp.float32)  # (B, D)

    # ---- patient_encoder ---------------------------------------------------
    pe = jnp.maximum(
        jnp.dot(pooled, wseg("wp1"), preferred_element_type=jnp.float32)
        + bseg("bp1"), 0.0)
    pe = jnp.dot(pe, wseg("wp2"), preferred_element_type=jnp.float32) + bseg("bp2")

    # ---- patient_predictor (task 0, lane-padded) + softmax -----------------
    logits = (jnp.dot(pe, wseg("wpr"), preferred_element_type=jnp.float32)
              + bseg("bpr"))                                          # (B, 128)
    logits = logits - jnp.max(logits, axis=-1, keepdims=True)
    e = jnp.exp(logits)                       # padded lanes underflow to exactly 0
    out_ref[...] = e * pl.reciprocal(jnp.sum(e, axis=-1, keepdims=True))


# ---------------------------------------------------------------------------
# wrapper
# ---------------------------------------------------------------------------
def _pack_params(params):
    (w1, b1, w2, b2, wq, wk, wv, wo, ln1g, ln1b,
     wf1, bf1, wf2, bf2, ln2g, ln2b, wp1, bp1, wp2, bp2, wpr, bpr) = params
    wa = jnp.concatenate([w1, wf2], axis=1)                           # (G, 2D)
    wpr_pad = jnp.pad(wpr[:, 0:K], ((0, 0), (0, KPAD - K)))           # (D, 128)
    bpr_pad = jnp.concatenate(
        [bpr[:, 0:K], jnp.full((1, KPAD - K), -1e9, jnp.float32)], axis=1)
    wd = jnp.concatenate(
        [wpr_pad, wf1, w2, wq, wk, wv, wo, wp1, wp2], axis=1)         # (D, 416)
    bv = jnp.concatenate(
        [bpr_pad, bf1, b1, b2, bf2, ln1g, ln1b, ln2g, ln2b, bp1, bp2], axis=1)
    return wa, wd, bv


@jax.jit
def forward_model(x, padding_mask, params):
    """x: (B, C, G) f32; padding_mask: (B, C) f32 (1 = valid). -> (B, K) probs."""
    wa, wd, bv = _pack_params(params)
    x2d = x.reshape(BC, G)

    # block-diagonal (same-patient) + key-padding additive attention bias
    pid = jnp.arange(BC, dtype=jnp.int32) // C
    same = (pid[:, None] == pid[None, :]).astype(jnp.float32)         # (BC, BC)
    key_valid = padding_mask.reshape(1, BC)                           # (1, BC)
    attn_bias = (1.0 - same * key_valid) * (-1e9)

    # masked-mean pooling weights, one row per patient
    counts = jnp.maximum(jnp.sum(padding_mask, axis=1, keepdims=True), 1.0)
    sel = (jnp.arange(B, dtype=jnp.int32)[:, None] == pid[None, :]).astype(jnp.float32)
    pool_w = sel * key_valid / counts                                 # (B, BC)

    out_pad = pl.pallas_call(
        forward_kernel,
        out_shape=jax.ShapeDtypeStruct((B, KPAD), jnp.float32),
        grid=(1,),
        in_specs=[
            pl.BlockSpec((BC, G), lambda i: (0, 0)),        # x (folded batch)
            pl.BlockSpec((BC, BC), lambda i: (0, 0)),       # attention bias
            pl.BlockSpec((B, BC), lambda i: (0, 0)),        # pooling weights
            pl.BlockSpec((G, 2 * D), lambda i: (0, 0)),     # packed [w1|wf2]
            pl.BlockSpec((D, WD_LANES), lambda i: (0, 0)),  # packed (D, .) weights
            pl.BlockSpec((1, BV_LANES), lambda i: (0, 0)),  # packed biases/LN
        ],
        out_specs=pl.BlockSpec((B, KPAD), lambda i: (0, 0)),
        compiler_params=pltpu.CompilerParams(
            dimension_semantics=("arbitrary",)),
    )(x2d, attn_bias, pool_w, wa, wd, bv)
    return out_pad[:, 0:K]


# ---------------------------------------------------------------------------
# pure-JAX reference (same math, no Pallas) for verification
# ---------------------------------------------------------------------------
def forward_reference(x, padding_mask, params):
    (w1, b1, w2, b2, wq, wk, wv, wo, ln1g, ln1b,
     wf1, bf1, wf2, bf2, ln2g, ln2b, wp1, bp1, wp2, bp2, wpr, bpr) = params

    def ln(h, g, b):
        mu = h.mean(-1, keepdims=True)
        var = ((h - mu) ** 2).mean(-1, keepdims=True)
        return (h - mu) / jnp.sqrt(var + LN_EPS) * g + b

    cell = jnp.maximum(x @ w1 + b1, 0.0) @ w2 + b2                    # (B, C, D)
    q, k, v = cell @ wq, cell @ wk, cell @ wv
    scores = jnp.einsum("bqd,bkd->bqk", q, k) / jnp.sqrt(jnp.float32(D))
    scores = scores + (1.0 - padding_mask)[:, None, :] * (-1e9)
    p_attn = jax.nn.softmax(scores, axis=-1)
    attn = jnp.einsum("bqk,bkd->bqd", p_attn, v) @ wo
    h1 = ln(cell + attn, ln1g, ln1b)
    ff = jnp.maximum(h1 @ wf1 + bf1, 0.0) @ wf2 + bf2
    h2 = ln(h1 + ff, ln2g, ln2b)
    m = padding_mask[:, :, None]
    pooled = (h2 * m).sum(1) / jnp.maximum(m.sum(1), 1.0)             # (B, D)
    pe = jnp.maximum(pooled @ wp1 + bp1, 0.0) @ wp2 + bp2
    logits = (pe @ wpr + bpr).reshape(B, T, K)[:, 0]
    return jax.nn.softmax(logits, axis=-1)


# ---------------------------------------------------------------------------
# deterministic parameter construction
# ---------------------------------------------------------------------------
def make_params(key):
    keys = jax.random.split(key, 16)

    def w(k, shape, scale):
        return jax.random.normal(k, shape, dtype=jnp.float32) * scale

    w1 = w(keys[0], (G, D), 0.1);   b1 = jnp.zeros((1, D), jnp.float32)
    w2 = w(keys[1], (D, D), 0.1);   b2 = jnp.zeros((1, D), jnp.float32)
    wq = w(keys[2], (D, D), 0.1)
    wk = w(keys[3], (D, D), 0.1)
    wv = w(keys[4], (D, D), 0.1)
    wo = w(keys[5], (D, D), 0.1)
    ln1g = jnp.ones((1, D), jnp.float32); ln1b = jnp.zeros((1, D), jnp.float32)
    wf1 = w(keys[6], (D, 2 * D), 0.1); bf1 = jnp.zeros((1, 2 * D), jnp.float32)
    wf2 = w(keys[7], (2 * D, D), 0.1); bf2 = jnp.zeros((1, D), jnp.float32)
    ln2g = jnp.ones((1, D), jnp.float32); ln2b = jnp.zeros((1, D), jnp.float32)
    wp1 = w(keys[8], (D, D), 0.1);  bp1 = jnp.zeros((1, D), jnp.float32)
    wp2 = w(keys[9], (D, D), 0.1);  bp2 = jnp.zeros((1, D), jnp.float32)
    wpr = w(keys[10], (D, T * K), 0.1); bpr = jnp.zeros((1, T * K), jnp.float32)
    return (w1, b1, w2, b2, wq, wk, wv, wo, ln1g, ln1b,
            wf1, bf1, wf2, bf2, ln2g, ln2b, wp1, bp1, wp2, bp2, wpr, bpr)


if __name__ == "__main__":
    key = jax.random.PRNGKey(0)
    k_x, k_p = jax.random.split(key)

    x = jax.random.normal(k_x, (B, C, G), dtype=jnp.float32)
    # patient 0 has 12 valid cells, patient 1 has 16 (mask: 1 = valid)
    valid_counts = jnp.array([12, 16], dtype=jnp.int32)
    padding_mask = (jnp.arange(C)[None, :] < valid_counts[:, None]).astype(jnp.float32)

    params = make_params(k_p)

    probs = forward_model(x, padding_mask, params)
    probs = jax.block_until_ready(probs)

    ref = forward_reference(x, padding_mask, params)
    assert probs.shape == (B, K)
    # final softmax uses the exact reciprocal -> rows sum to 1 within f32 rounding
    assert jnp.allclose(jnp.sum(probs, axis=-1), 1.0, atol=1e-5)
    # tolerance relaxed slightly vs 1e-5 to allow for the approx (EUP) reciprocal
    # in the attention softmax normalization
    assert jnp.allclose(probs, ref, atol=2e-3, rtol=2e-3)

    print("KERNEL_OK")
</pallas_src>

<mosaic_0001>
module attributes {stable_mosaic.version = 11 : i64} {
  func.func @forward_kernel(%arg0: i32, %arg1: memref<32x64xf32, #tpu.memory_space<vmem>>, %arg2: memref<32x32xf32, #tpu.memory_space<vmem>>, %arg3: memref<2x32xf32, #tpu.memory_space<vmem>>, %arg4: memref<64x64xf32, #tpu.memory_space<vmem>>, %arg5: memref<32x416xf32, #tpu.memory_space<vmem>>, %arg6: memref<1x480xf32, #tpu.memory_space<vmem>>, %arg7: memref<2x128xf32, #tpu.memory_space<vmem>>) attributes {dimension_semantics = [#tpu.dimension_semantics<arbitrary>], iteration_bounds = array<i64: 1>, scalar_prefetch = 0 : i64, scratch_operands = 0 : i64, tpu.core_type = #tpu.core_type<tc>, window_params = [{pipeline_mode = #tpu.pipeline_mode<synchronous>, transform_indices = @transform_0, window_bounds = array<i64: 32, 64>}, {pipeline_mode = #tpu.pipeline_mode<synchronous>, transform_indices = @transform_1, window_bounds = array<i64: 32, 32>}, {pipeline_mode = #tpu.pipeline_mode<synchronous>, transform_indices = @transform_2, window_bounds = array<i64: 2, 32>}, {pipeline_mode = #tpu.pipeline_mode<synchronous>, transform_indices = @transform_3, window_bounds = array<i64: 64, 64>}, {pipeline_mode = #tpu.pipeline_mode<synchronous>, transform_indices = @transform_4, window_bounds = array<i64: 32, 416>}, {pipeline_mode = #tpu.pipeline_mode<synchronous>, transform_indices = @transform_5, window_bounds = array<i64: 1, 480>}, {pipeline_mode = #tpu.pipeline_mode<synchronous>, transform_indices = @transform_6, window_bounds = array<i64: 2, 128>}]} {
    %c0 = arith.constant 0 : index
    %c0_0 = arith.constant 0 : index
    %0 = vector.load %arg1[%c0, %c0_0] : memref<32x64xf32, #tpu.memory_space<vmem>>, vector<32x64xf32>
    %c0_1 = arith.constant 0 : index
    %c0_2 = arith.constant 0 : index
    %1 = vector.load %arg4[%c0_1, %c0_2] : memref<64x64xf32, #tpu.memory_space<vmem>>, vector<64x32xf32>
    %c0_3 = arith.constant 0 : index
    %c32 = arith.constant 32 : index
    %2 = vector.load %arg4[%c0_3, %c32] : memref<64x64xf32, #tpu.memory_space<vmem>>, vector<64x32xf32>
    %cst = arith.constant dense<0.000000e+00> : vector<32x32xf32>
    %3 = tpu.matmul %0, %1, %cst {dimension_numbers = #tpu.dot_dimension_numbers<[1], [0], [0], [1], [0, 0, 1, 1], [], []>} : vector<32x64xf32>, vector<64x32xf32>, vector<32x32xf32> -> vector<32x32xf32>
    %c0_4 = arith.constant 0 : index
    %c192 = arith.constant 192 : index
    %4 = vector.load %arg6[%c0_4, %c192] : memref<1x480xf32, #tpu.memory_space<vmem>>, vector<1x32xf32>
    %5 = vector.broadcast %4 : vector<1x32xf32> to vector<32x32xf32>
    %6 = arith.addf %3, %5 : vector<32x32xf32>
    %cst_5 = arith.constant 0.000000e+00 : f32
    %7 = vector.broadcast %cst_5 : f32 to vector<32x32xf32>
    %8 = arith.maximumf %6, %7 : vector<32x32xf32>
    %c0_6 = arith.constant 0 : index
    %c192_7 = arith.constant 192 : index
    %9 = vector.load %arg5[%c0_6, %c192_7] : memref<32x416xf32, #tpu.memory_space<vmem>>, vector<32x32xf32>
    %cst_8 = arith.constant dense<0.000000e+00> : vector<32x32xf32>
    %10 = tpu.matmul %8, %9, %cst_8 {dimension_numbers = #tpu.dot_dimension_numbers<[1], [0], [0], [1], [0, 0, 1, 1], [], []>} : vector<32x32xf32>, vector<32x32xf32>, vector<32x32xf32> -> vector<32x32xf32>
    %c0_9 = arith.constant 0 : index
    %c224 = arith.constant 224 : index
    %11 = vector.load %arg6[%c0_9, %c224] : memref<1x480xf32, #tpu.memory_space<vmem>>, vector<1x32xf32>
    %12 = vector.broadcast %11 : vector<1x32xf32> to vector<32x32xf32>
    %13 = arith.addf %10, %12 : vector<32x32xf32>
    %c0_10 = arith.constant 0 : index
    %c224_11 = arith.constant 224 : index
    %14 = vector.load %arg5[%c0_10, %c224_11] : memref<32x416xf32, #tpu.memory_space<vmem>>, vector<32x32xf32>
    %cst_12 = arith.constant dense<0.000000e+00> : vector<32x32xf32>
    %15 = tpu.matmul %13, %14, %cst_12 {dimension_numbers = #tpu.dot_dimension_numbers<[1], [0], [0], [1], [0, 0, 1, 1], [], []>} : vector<32x32xf32>, vector<32x32xf32>, vector<32x32xf32> -> vector<32x32xf32>
    %c0_13 = arith.constant 0 : index
    %c256 = arith.constant 256 : index
    %16 = vector.load %arg5[%c0_13, %c256] : memref<32x416xf32, #tpu.memory_space<vmem>>, vector<32x32xf32>
    %cst_14 = arith.constant dense<0.000000e+00> : vector<32x32xf32>
    %17 = tpu.matmul %13, %16, %cst_14 {dimension_numbers = #tpu.dot_dimension_numbers<[1], [0], [0], [1], [0, 0, 1, 1], [], []>} : vector<32x32xf32>, vector<32x32xf32>, vector<32x32xf32> -> vector<32x32xf32>
    %c0_15 = arith.constant 0 : index
    %c288 = arith.constant 288 : index
    %18 = vector.load %arg5[%c0_15, %c288] : memref<32x416xf32, #tpu.memory_space<vmem>>, vector<32x32xf32>
    %cst_16 = arith.constant dense<0.000000e+00> : vector<32x32xf32>
    %19 = tpu.matmul %13, %18, %cst_16 {dimension_numbers = #tpu.dot_dimension_numbers<[1], [0], [0], [1], [0, 0, 1, 1], [], []>} : vector<32x32xf32>, vector<32x32xf32>, vector<32x32xf32> -> vector<32x32xf32>
    %cst_17 = arith.constant 3.200000e+01 : f32
    %20 = math.sqrt %cst_17 : f32
    %cst_18 = arith.constant 1.000000e+00 : f32
    %21 = arith.divf %cst_18, %20 : f32
    %cst_19 = arith.constant dense<0.000000e+00> : vector<32x32xf32>
    %22 = tpu.matmul %15, %17, %cst_19 {dimension_numbers = #tpu.dot_dimension_numbers<[1], [1], [0], [0], [0, 0, 1, 0], [], []>} : vector<32x32xf32>, vector<32x32xf32>, vector<32x32xf32> -> vector<32x32xf32>
    %23 = vector.broadcast %21 : f32 to vector<32x32xf32>
    %24 = arith.mulf %22, %23 : vector<32x32xf32>
    %c0_20 = arith.constant 0 : index
    %c0_21 = arith.constant 0 : index
    %25 = vector.load %arg2[%c0_20, %c0_21] : memref<32x32xf32, #tpu.memory_space<vmem>>, vector<32x32xf32>
    %26 = arith.addf %24, %25 : vector<32x32xf32>
    %cst_22 = arith.constant dense<0xFF800000> : vector<32xf32>
    %27 = vector.multi_reduction <maximumf>, %26, %cst_22 [1] : vector<32x32xf32> to vector<32xf32>
    %28 = vector.shape_cast %27 : vector<32xf32> to vector<32x1xf32>
    %29 = vector.broadcast %28 : vector<32x1xf32> to vector<32x32xf32>
    %30 = arith.subf %26, %29 : vector<32x32xf32>
    %31 = math.exp %30 : vector<32x32xf32>
    %cst_23 = arith.constant dense<0.000000e+00> : vector<32xf32>
    %32 = vector.multi_reduction <add>, %31, %cst_23 [1] : vector<32x32xf32> to vector<32xf32>
    %33 = vector.shape_cast %32 : vector<32xf32> to vector<32x1xf32>
    %34 = tpu.reciprocal %33 {approx = true} : vector<32x1xf32> -> vector<32x1xf32>
    %35 = vector.broadcast %34 : vector<32x1xf32> to vector<32x32xf32>
    %36 = arith.mulf %31, %35 : vector<32x32xf32>
    %cst_24 = arith.constant dense<0.000000e+00> : vector<32x32xf32>
    %37 = tpu.matmul %36, %19, %cst_24 {dimension_numbers = #tpu.dot_dimension_numbers<[1], [0], [0], [1], [0, 0, 1, 1], [], []>} : vector<32x32xf32>, vector<32x32xf32>, vector<32x32xf32> -> vector<32x32xf32>
    %c0_25 = arith.constant 0 : index
    %c320 = arith.constant 320 : index
    %38 = vector.load %arg5[%c0_25, %c320] : memref<32x416xf32, #tpu.memory_space<vmem>>, vector<32x32xf32>
    %cst_26 = arith.constant dense<0.000000e+00> : vector<32x32xf32>
    %39 = tpu.matmul %37, %38, %cst_26 {dimension_numbers = #tpu.dot_dimension_numbers<[1], [0], [0], [1], [0, 0, 1, 1], [], []>} : vector<32x32xf32>, vector<32x32xf32>, vector<32x32xf32> -> vector<32x32xf32>
    %40 = arith.addf %13, %39 : vector<32x32xf32>
    %c0_27 = arith.constant 0 : index
    %c288_28 = arith.constant 288 : index
    %41 = vector.load %arg6[%c0_27, %c288_28] : memref<1x480xf32, #tpu.memory_space<vmem>>, vector<1x32xf32>
    %c0_29 = arith.constant 0 : index
    %c320_30 = arith.constant 320 : index
    %42 = vector.load %arg6[%c0_29, %c320_30] : memref<1x480xf32, #tpu.memory_space<vmem>>, vector<1x32xf32>
    %cst_31 = arith.constant dense<0.000000e+00> : vector<32xf32>
    %43 = vector.multi_reduction <add>, %40, %cst_31 [1] : vector<32x32xf32> to vector<32xf32>
    %44 = vector.shape_cast %43 : vector<32xf32> to vector<32x1xf32>
    %cst_32 = arith.constant 3.200000e+01 : f32
    %45 = vector.broadcast %cst_32 : f32 to vector<32x1xf32>
    %46 = arith.divf %44, %45 : vector<32x1xf32>
    %47 = vector.broadcast %46 : vector<32x1xf32> to vector<32x32xf32>
    %48 = arith.subf %40, %47 : vector<32x32xf32>
    %49 = arith.mulf %48, %48 : vector<32x32xf32>
    %cst_33 = arith.constant dense<0.000000e+00> : vector<32xf32>
    %50 = vector.multi_reduction <add>, %49, %cst_33 [1] : vector<32x32xf32> to vector<32xf32>
    %51 = vector.shape_cast %50 : vector<32xf32> to vector<32x1xf32>
    %cst_34 = arith.constant 3.200000e+01 : f32
    %52 = vector.broadcast %cst_34 : f32 to vector<32x1xf32>
    %53 = arith.divf %51, %52 : vector<32x1xf32>
    %54 = vector.broadcast %46 : vector<32x1xf32> to vector<32x32xf32>
    %55 = arith.subf %40, %54 : vector<32x32xf32>
    %cst_35 = arith.constant 9.99999974E-6 : f32
    %56 = vector.broadcast %cst_35 : f32 to vector<32x1xf32>
    %57 = arith.addf %53, %56 : vector<32x1xf32>
    %58 = math.rsqrt %57 : vector<32x1xf32>
    %59 = vector.broadcast %58 : vector<32x1xf32> to vector<32x32xf32>
    %60 = arith.mulf %55, %59 : vector<32x32xf32>
    %61 = vector.broadcast %41 : vector<1x32xf32> to vector<32x32xf32>
    %62 = arith.mulf %60, %61 : vector<32x32xf32>
    %63 = vector.broadcast %42 : vector<1x32xf32> to vector<32x32xf32>
    %64 = arith.addf %62, %63 : vector<32x32xf32>
    %c0_36 = arith.constant 0 : index
    %c128 = arith.constant 128 : index
    %65 = vector.load %arg5[%c0_36, %c128] : memref<32x416xf32, #tpu.memory_space<vmem>>, vector<32x64xf32>
    %cst_37 = arith.constant dense<0.000000e+00> : vector<32x64xf32>
    %66 = tpu.matmul %64, %65, %cst_37 {dimension_numbers = #tpu.dot_dimension_numbers<[1], [0], [0], [1], [0, 0, 1, 1], [], []>} : vector<32x32xf32>, vector<32x64xf32>, vector<32x64xf32> -> vector<32x64xf32>
    %c0_38 = arith.constant 0 : index
    %c128_39 = arith.constant 128 : index
    %67 = vector.load %arg6[%c0_38, %c128_39] : memref<1x480xf32, #tpu.memory_space<vmem>>, vector<1x64xf32>
    %68 = vector.broadcast %67 : vector<1x64xf32> to vector<32x64xf32>
    %69 = arith.addf %66, %68 : vector<32x64xf32>
    %cst_40 = arith.constant 0.000000e+00 : f32
    %70 = vector.broadcast %cst_40 : f32 to vector<32x64xf32>
    %71 = arith.maximumf %69, %70 : vector<32x64xf32>
    %cst_41 = arith.constant dense<0.000000e+00> : vector<32x32xf32>
    %72 = tpu.matmul %71, %2, %cst_41 {dimension_numbers = #tpu.dot_dimension_numbers<[1], [0], [0], [1], [0, 0, 1, 1], [], []>} : vector<32x64xf32>, vector<64x32xf32>, vector<32x32xf32> -> vector<32x32xf32>
    %c0_42 = arith.constant 0 : index
    %c256_43 = arith.constant 256 : index
    %73 = vector.load %arg6[%c0_42, %c256_43] : memref<1x480xf32, #tpu.memory_space<vmem>>, vector<1x32xf32>
    %74 = vector.broadcast %73 : vector<1x32xf32> to vector<32x32xf32>
    %75 = arith.addf %72, %74 : vector<32x32xf32>
    %76 = arith.addf %64, %75 : vector<32x32xf32>
    %c0_44 = arith.constant 0 : index
    %c352 = arith.constant 352 : index
    %77 = vector.load %arg6[%c0_44, %c352] : memref<1x480xf32, #tpu.memory_space<vmem>>, vector<1x32xf32>
    %c0_45 = arith.constant 0 : index
    %c384 = arith.constant 384 : index
    %78 = vector.load %arg6[%c0_45, %c384] : memref<1x480xf32, #tpu.memory_space<vmem>>, vector<1x32xf32>
    %cst_46 = arith.constant dense<0.000000e+00> : vector<32xf32>
    %79 = vector.multi_reduction <add>, %76, %cst_46 [1] : vector<32x32xf32> to vector<32xf32>
    %80 = vector.shape_cast %79 : vector<32xf32> to vector<32x1xf32>
    %cst_47 = arith.constant 3.200000e+01 : f32
    %81 = vector.broadcast %cst_47 : f32 to vector<32x1xf32>
    %82 = arith.divf %80, %81 : vector<32x1xf32>
    %83 = vector.broadcast %82 : vector<32x1xf32> to vector<32x32xf32>
    %84 = arith.subf %76, %83 : vector<32x32xf32>
    %85 = arith.mulf %84, %84 : vector<32x32xf32>
    %cst_48 = arith.constant dense<0.000000e+00> : vector<32xf32>
    %86 = vector.multi_reduction <add>, %85, %cst_48 [1] : vector<32x32xf32> to vector<32xf32>
    %87 = vector.shape_cast %86 : vector<32xf32> to vector<32x1xf32>
    %cst_49 = arith.constant 3.200000e+01 : f32
    %88 = vector.broadcast %cst_49 : f32 to vector<32x1xf32>
    %89 = arith.divf %87, %88 : vector<32x1xf32>
    %90 = vector.broadcast %82 : vector<32x1xf32> to vector<32x32xf32>
    %91 = arith.subf %76, %90 : vector<32x32xf32>
    %cst_50 = arith.constant 9.99999974E-6 : f32
    %92 = vector.broadcast %cst_50 : f32 to vector<32x1xf32>
    %93 = arith.addf %89, %92 : vector<32x1xf32>
    %94 = math.rsqrt %93 : vector<32x1xf32>
    %95 = vector.broadcast %94 : vector<32x1xf32> to vector<32x32xf32>
    %96 = arith.mulf %91, %95 : vector<32x32xf32>
    %97 = vector.broadcast %77 : vector<1x32xf32> to vector<32x32xf32>
    %98 = arith.mulf %96, %97 : vector<32x32xf32>
    %99 = vector.broadcast %78 : vector<1x32xf32> to vector<32x32xf32>
    %100 = arith.addf %98, %99 : vector<32x32xf32>
    %c0_51 = arith.constant 0 : index
    %c0_52 = arith.constant 0 : index
    %101 = vector.load %arg3[%c0_51, %c0_52] : memref<2x32xf32, #tpu.memory_space<vmem>>, vector<2x32xf32>
    %cst_53 = arith.constant dense<0.000000e+00> : vector<2x32xf32>
    %102 = tpu.matmul %101, %100, %cst_53 {dimension_numbers = #tpu.dot_dimension_numbers<[1], [0], [0], [1], [0, 0, 1, 1], [], []>} : vector<2x32xf32>, vector<32x32xf32>, vector<2x32xf32> -> vector<2x32xf32>
    %c0_54 = arith.constant 0 : index
    %c352_55 = arith.constant 352 : index
    %103 = vector.load %arg5[%c0_54, %c352_55] : memref<32x416xf32, #tpu.memory_space<vmem>>, vector<32x32xf32>
    %cst_56 = arith.constant dense<0.000000e+00> : vector<2x32xf32>
    %104 = tpu.matmul %102, %103, %cst_56 {dimension_numbers = #tpu.dot_dimension_numbers<[1], [0], [0], [1], [0, 0, 1, 1], [], []>} : vector<2x32xf32>, vector<32x32xf32>, vector<2x32xf32> -> vector<2x32xf32>
    %c0_57 = arith.constant 0 : index
    %c416 = arith.constant 416 : index
    %105 = vector.load %arg6[%c0_57, %c416] : memref<1x480xf32, #tpu.memory_space<vmem>>, vector<1x32xf32>
    %106 = vector.broadcast %105 : vector<1x32xf32> to vector<2x32xf32>
    %107 = arith.addf %104, %106 : vector<2x32xf32>
    %cst_58 = arith.constant 0.000000e+00 : f32
    %108 = vector.broadcast %cst_58 : f32 to vector<2x32xf32>
    %109 = arith.maximumf %107, %108 : vector<2x32xf32>
    %c0_59 = arith.constant 0 : index
    %c384_60 = arith.constant 384 : index
    %110 = vector.load %arg5[%c0_59, %c384_60] : memref<32x416xf32, #tpu.memory_space<vmem>>, vector<32x32xf32>
    %cst_61 = arith.constant dense<0.000000e+00> : vector<2x32xf32>
    %111 = tpu.matmul %109, %110, %cst_61 {dimension_numbers = #tpu.dot_dimension_numbers<[1], [0], [0], [1], [0, 0, 1, 1], [], []>} : vector<2x32xf32>, vector<32x32xf32>, vector<2x32xf32> -> vector<2x32xf32>
    %c0_62 = arith.constant 0 : index
    %c448 = arith.constant 448 : index
    %112 = vector.load %arg6[%c0_62, %c448] : memref<1x480xf32, #tpu.memory_space<vmem>>, vector<1x32xf32>
    %113 = vector.broadcast %112 : vector<1x32xf32> to vector<2x32xf32>
    %114 = arith.addf %111, %113 : vector<2x32xf32>
    %c0_63 = arith.constant 0 : index
    %c0_64 = arith.constant 0 : index
    %115 = vector.load %arg5[%c0_63, %c0_64] : memref<32x416xf32, #tpu.memory_space<vmem>>, vector<32x128xf32>
    %cst_65 = arith.constant dense<0.000000e+00> : vector<2x128xf32>
    %116 = tpu.matmul %114, %115, %cst_65 {dimension_numbers = #tpu.dot_dimension_numbers<[1], [0], [0], [1], [0, 0, 1, 1], [], []>} : vector<2x32xf32>, vector<32x128xf32>, vector<2x128xf32> -> vector<2x128xf32>
    %c0_66 = arith.constant 0 : index
    %c0_67 = arith.constant 0 : index
    %117 = vector.load %arg6[%c0_66, %c0_67] : memref<1x480xf32, #tpu.memory_space<vmem>>, vector<1x128xf32>
    %118 = vector.broadcast %117 : vector<1x128xf32> to vector<2x128xf32>
    %119 = arith.addf %116, %118 : vector<2x128xf32>
    %cst_68 = arith.constant dense<0xFF800000> : vector<2xf32>
    %120 = vector.multi_reduction <maximumf>, %119, %cst_68 [1] : vector<2x128xf32> to vector<2xf32>
    %121 = vector.shape_cast %120 : vector<2xf32> to vector<2x1xf32>
    %122 = vector.broadcast %121 : vector<2x1xf32> to vector<2x128xf32>
    %123 = arith.subf %119, %122 : vector<2x128xf32>
    %124 = math.exp %123 : vector<2x128xf32>
    %cst_69 = arith.constant dense<0.000000e+00> : vector<2xf32>
    %125 = vector.multi_reduction <add>, %124, %cst_69 [1] : vector<2x128xf32> to vector<2xf32>
    %126 = vector.shape_cast %125 : vector<2xf32> to vector<2x1xf32>
    %127 = tpu.reciprocal %126 : vector<2x1xf32> -> vector<2x1xf32>
    %128 = vector.broadcast %127 : vector<2x1xf32> to vector<2x128xf32>
    %129 = arith.mulf %124, %128 : vector<2x128xf32>
    %c0_70 = arith.constant 0 : index
    %c0_71 = arith.constant 0 : index
    %130 = vector.load %arg7[%c0_70, %c0_71] : memref<2x128xf32, #tpu.memory_space<vmem>>, vector<2x128xf32>
    tpu.vector_store %arg7[%c0_70, %c0_71], %129 {strides = array<i32>} : memref<2x128xf32, #tpu.memory_space<vmem>>, vector<2x128xf32>,
    return
  }
  func.func @transform_0(%arg0: i32) -> (i32, i32) {
    %c0_i32 = arith.constant 0 : i32
    %c0_i32_0 = arith.constant 0 : i32
    %c0_i32_1 = arith.constant 0 : i32
    return %c0_i32, %c0_i32_0 : i32, i32
  }
  func.func @transform_1(%arg0: i32) -> (i32, i32) {
    %c0_i32 = arith.constant 0 : i32
    %c0_i32_0 = arith.constant 0 : i32
    %c0_i32_1 = arith.constant 0 : i32
    return %c0_i32, %c0_i32_0 : i32, i32
  }
  func.func @transform_2(%arg0: i32) -> (i32, i32) {
    %c0_i32 = arith.constant 0 : i32
    %c0_i32_0 = arith.constant 0 : i32
    %c0_i32_1 = arith.constant 0 : i32
    return %c0_i32, %c0_i32_0 : i32, i32
  }
  func.func @transform_3(%arg0: i32) -> (i32, i32) {
    %c0_i32 = arith.constant 0 : i32
    %c0_i32_0 = arith.constant 0 : i32
    %c0_i32_1 = arith.constant 0 : i32
    return %c0_i32, %c0_i32_0 : i32, i32
  }
  func.func @transform_4(%arg0: i32) -> (i32, i32) {
    %c0_i32 = arith.constant 0 : i32
    %c0_i32_0 = arith.constant 0 : i32
    %c0_i32_1 = arith.constant 0 : i32
    return %c0_i32, %c0_i32_0 : i32, i32
  }
  func.func @transform_5(%arg0: i32) -> (i32, i32) {
    %c0_i32 = arith.constant 0 : i32
    %c0_i32_0 = arith.constant 0 : i32
    %c0_i32_1 = arith.constant 0 : i32
    return %c0_i32, %c0_i32_0 : i32, i32
  }
  func.func @transform_6(%arg0: i32) -> (i32, i32) {
    %c0_i32 = arith.constant 0 : i32
    %c0_i32_0 = arith.constant 0 : i32
    %c0_i32_1 = arith.constant 0 : i32
    return %c0_i32, %c0_i32_0 : i32, i32
  }
}

</mosaic_0001>

<llo_original>
// kernel: mul.12
$region0: #{mul.12}
  %s0 = inlined_call_operand.vmem [shape: f32[2,16], index: 0, kind: input, shape index: {}]
  %s1 = inlined_call_operand.vmem [shape: f32[32], index: 1, kind: output, shape index: {}]
  $region1: #{mul.12} parent=0
    #allocation0 [shape = 'u8[4096]{0}', space=vmem, size = 0x1000, scoped, tag = 'scoped mem for output reshape']
    #allocation1 [shape = 'u8[4096]{0}', space=vmem, size = 0x1000, scoped, tag = 'scoped mem for input reshape']
    %s3 = ssub.s32 4, 1
    %v4 = vld [vmem:[%s0] sm:%s3]
    %5 = vst [vmem:[#allocation1] sm:%s3] %v4
    %v6 = vld [vmem:[#allocation1] sm:$0x1]
    %vm7 = vcmask 130048
    %8 = vst.msk [vmem:[#allocation0] sm:$0x1] %vm7, %v6
    %s9 = scalar_lea.vmem [#allocation1], 1
    %v10 = vld [vmem:[%s9] sm:$0x1]
    %11 = vrot.lane.b32.xlu0 %v10, 16
    %v12 = vpop.permute.xlu0 %11
    %vm13 = vcmask 261248
    %14 = vst.msk [vmem:[#allocation0] sm:$0x1] %vm13, %v12
    %s16 = ssub.s32 2, 1
    %v17 = vld [vmem:[#allocation0] sm:%s16]
    %s19 = ssub.s32 2, 1
    %20 = vst [vmem:[%s1] sm:%s19] %v17

// kernel: forward_model.1
$region0: #{forward_model.1}
  #allocation0 [shape = 'u32[]', space=smem, size = 0x4, offset = 0x4, fixed_abs, tag = 'smem constant byte address 0x4 - core index']
  #allocation1 [shape = 'u32[72,128]{1,0:T(1,128)}', space=vmem, size = 0x9000, scoped, tag = 'internal scratch']
  %s0 = inlined_call_operand.vmem [shape: f32[32,64], index: 0, kind: input, shape index: {}]
  %s1 = inlined_call_operand.vmem [shape: f32[32,32], index: 1, kind: input, shape index: {}]
  %s2 = inlined_call_operand.vmem [shape: f32[2,32], index: 2, kind: input, shape index: {}]
  %s3 = inlined_call_operand.vmem [shape: f32[64,64], index: 3, kind: input, shape index: {}]
  %s4 = inlined_call_operand.vmem [shape: f32[32,416], index: 4, kind: input, shape index: {}]
  %s5 = inlined_call_operand.vmem [shape: f32[1,480], index: 5, kind: input, shape index: {}]
  %s6 = inlined_call_operand.hbm [shape: f32[2,128], index: 6, kind: output, shape index: {}]
  %s7 = sld [smem:[#allocation0]]
  $region34: #{forward_model.1} parent=0
    _
  %s9 = ssub.s32 1, %s7
  %s10 = scalar_select 0, %s9, %s7
  $region1: #{forward_model.1} parent=0
    #allocation2 [shape = 'u8[1024]{0}', space=vmem, size = 0x400, scoped, tag = 'output window, operand 0, single buffered']
    #allocation3 [shape = 's32[1]{0}', space=sflag, size = 0x4, scoped, tag = 'scoped memory for forward_model.1']
    %11 = vsyncpa [#allocation3], 0
    // Predicated region
    $region2: #{forward_model.1} parent=1 // pred_check
      _
    $region3: #{forward_model.1} parent=1 // pred_check_branch
      %13 = sbr.rel (0) target = $region5
    $region4: #{forward_model.1} parent=1 // pred_region
      _
    $region5: #{forward_model.1} parent=1 // pred_fallthru
      _
    // Predicated region
    $region6: #{forward_model.1} parent=1 // pred_check
      _
    $region7: #{forward_model.1} parent=1 // pred_check_branch
      %15 = sbr.rel (0) target = $region9
    $region8: #{forward_model.1} parent=1 // pred_region
      _
    $region9: #{forward_model.1} parent=1 // pred_fallthru
      _
    // Predicated region
    $region10: #{forward_model.1} parent=1 // pred_check
      _
    $region11: #{forward_model.1} parent=1 // pred_check_branch
      %17 = sbr.rel (0) target = $region13
    $region12: #{forward_model.1} parent=1 // pred_region
      _
    $region13: #{forward_model.1} parent=1 // pred_fallthru
      _
    // Predicated region
    $region14: #{forward_model.1} parent=1 // pred_check
      _
    $region15: #{forward_model.1} parent=1 // pred_check_branch
      %19 = sbr.rel (0) target = $region17
    $region16: #{forward_model.1} parent=1 // pred_region
      _
    $region17: #{forward_model.1} parent=1 // pred_fallthru
      _
    // Predicated region
    $region18: #{forward_model.1} parent=1 // pred_check
      _
    $region19: #{forward_model.1} parent=1 // pred_check_branch
      %21 = sbr.rel (0) target = $region21
    $region20: #{forward_model.1} parent=1 // pred_region
      _
    $region21: #{forward_model.1} parent=1 // pred_fallthru
      _
    // Predicated region
    $region22: #{forward_model.1} parent=1 // pred_check
      _
    $region23: #{forward_model.1} parent=1 // pred_check_branch
      %23 = sbr.rel (0) target = $region25
    $region24: #{forward_model.1} parent=1 // pred_region
      _
    $region25: #{forward_model.1} parent=1 // pred_fallthru
      _
    %v24 = vld [vmem:[%s0] sm:$0xff]
    %v25 = vld [vmem:[%s0 + $0x8] sm:$0xff]
    %v26 = vld [vmem:[%s0 + $0x10] sm:$0xff]
    %v27 = vld [vmem:[%s0 + $0x18] sm:$0xff]
    %v28 = vld [vmem:[%s3] sm:$0xff]
    %v29 = vld [vmem:[%s3 + $0x8] sm:$0xff]
    %v30 = vld [vmem:[%s3 + $0x10] sm:$0xff]
    %v31 = vld [vmem:[%s3 + $0x18] sm:$0xff]
    %v32 = vld [vmem:[%s3 + $0x20] sm:$0xff]
    %v33 = vld [vmem:[%s3 + $0x28] sm:$0xff]
    %v34 = vld [vmem:[%s3 + $0x30] sm:$0xff]
    %v35 = vld [vmem:[%s3 + $0x38] sm:$0xff]
    %v36 = vld [vmem:[%s5 + $0x1] sm:$0x1]
    %v38 = vperm.slane %v36, 0
    %39 = vrot.lane.b32.xlu0 %v38, 64
    %v40 = vpop.permute.xlu0 %39
    %vm42 = vcmask 523264
    %v44 = vsel %vm42, %v24, 0
    %v47 = vsel %vm42, %v25, 0
    %v50 = vsel %vm42, %v26, 0
    %v53 = vsel %vm42, %v27, 0
    %55 = vmatpush.msra.mxu0 0.0
    %56 = vmatpush.msra.mxu0 0.0
    %57 = vmatpush.msra.mxu0 0.0
    %58 = vmatpush.msra.mxu0 0.0
    %59 = vmatpush.msra.mxu0 0.0
    %60 = vmatpush.msra.mxu0 0.0
    %61 = vmatpush.msra.mxu0 0.0
    %62 = vmatpush.msra.mxu0 0.0
    %63 = vmatpush.msra.mxu0 %v35
    %64 = vmatpush.msra.mxu0 %v34
    %65 = vmatpush.msra.mxu0 %v33
    %66 = vmatpush.msra.mxu0 %v32
    %67 = vmatpush.msra.mxu0 %v31
    %68 = vmatpush.msra.mxu0 %v30
    %69 = vmatpush.msra.mxu0 %v29
    %70 = vmatpush.msra.mxu0 %v28
    %71 = vmatmul.f32.gmra.mxu0 %v44
    %v72 = vpop.f32.mrf.mxu0
    %v73 = vadd.f32 %v40, %v72
    %74 = vmatmul.f32.gmra.mxu0 %v47
    %v75 = vpop.f32.mrf.mxu0
    %v76 = vadd.f32 %v40, %v75
    %77 = vmatmul.f32.gmra.mxu0 %v50
    %v78 = vpop.f32.mrf.mxu0
    %v79 = vadd.f32 %v40, %v78
    %80 = vmatmul.f32.gmra.mxu0 %v53
    %v81 = vpop.f32.mrf.mxu0
    %v82 = vadd.f32 %v40, %v81
    %83 = vdwg.mxu0
    %v84 = vmax.f32 %v73, 0.0
    %v85 = vmax.f32 %v76, 0.0
    %v86 = vmax.f32 %v79, 0.0
    %v87 = vmax.f32 %v82, 0.0
    %v88 = vld [vmem:[%s4 + $0x8] sm:$0xff]
    %v89 = vld [vmem:[%s4 + $0x28] sm:$0xff]
    %v90 = vld [vmem:[%s4 + $0x48] sm:$0xff]
    %v91 = vld [vmem:[%s4 + $0x68] sm:$0xff]
    %96 = vrot.lane.b32.xlu0 %v88, 64
    %v97 = vpop.permute.xlu0 %96
    %98 = vrot.lane.b32.xlu0 %v89, 64
    %v99 = vpop.permute.xlu0 %98
    %100 = vrot.lane.b32.xlu0 %v90, 64
    %v101 = vpop.permute.xlu0 %100
    %102 = vrot.lane.b32.xlu0 %v91, 64
    %v103 = vpop.permute.xlu0 %102
    %108 = vrot.lane.b32.xlu0 %v38, 32
    %v109 = vpop.permute.xlu0 %108
    %vm111 = vcmask 261120
    %v113 = vsel %vm111, %v84, 0
    %v116 = vsel %vm111, %v85, 0
    %v119 = vsel %vm111, %v86, 0
    %v122 = vsel %vm111, %v87, 0
    %124 = vmatpush.msra.mxu0 0.0
    %125 = vmatpush.msra.mxu0 0.0
    %126 = vmatpush.msra.mxu0 0.0
    %127 = vmatpush.msra.mxu0 0.0
    %128 = vmatpush.msra.mxu0 0.0
    %129 = vmatpush.msra.mxu0 0.0
    %130 = vmatpush.msra.mxu0 0.0
    %131 = vmatpush.msra.mxu0 0.0
    %132 = vmatpush.msra.mxu0 0.0
    %133 = vmatpush.msra.mxu0 0.0
    %134 = vmatpush.msra.mxu0 0.0
    %135 = vmatpush.msra.mxu0 0.0
    %136 = vmatpush.msra.mxu0 %v103
    %137 = vmatpush.msra.mxu0 %v101
    %138 = vmatpush.msra.mxu0 %v99
    %139 = vmatpush.msra.mxu0 %v97
    %140 = vmatmul.f32.gmra.mxu0 %v113
    %v141 = vpop.f32.mrf.mxu0
    %v142 = vadd.f32 %v109, %v141
    %143 = vmatmul.f32.gmra.mxu0 %v116
    %v144 = vpop.f32.mrf.mxu0
    %v145 = vadd.f32 %v109, %v144
    %146 = vmatmul.f32.gmra.mxu0 %v119
    %v147 = vpop.f32.mrf.mxu0
    %v148 = vadd.f32 %v109, %v147
    %149 = vmatmul.f32.gmra.mxu0 %v122
    %v150 = vpop.f32.mrf.mxu0
    %v151 = vadd.f32 %v109, %v150
    %152 = vdwg.mxu0
    %153 = vrot.lane.b32.xlu0 %v88, 32
    %v154 = vpop.permute.xlu0 %153
    %155 = vrot.lane.b32.xlu0 %v89, 32
    %v156 = vpop.permute.xlu0 %155
    %157 = vrot.lane.b32.xlu0 %v90, 32
    %v158 = vpop.permute.xlu0 %157
    %159 = vrot.lane.b32.xlu0 %v91, 32
    %v160 = vpop.permute.xlu0 %159
    %v166 = vsel %vm111, %v142, 0
    %v169 = vsel %vm111, %v145, 0
    %v172 = vsel %vm111, %v148, 0
    %v175 = vsel %vm111, %v151, 0
    %177 = vmatpush.msra.mxu0 0.0
    %178 = vmatpush.msra.mxu0 0.0
    %179 = vmatpush.msra.mxu0 0.0
    %180 = vmatpush.msra.mxu0 0.0
    %181 = vmatpush.msra.mxu0 0.0
    %182 = vmatpush.msra.mxu0 0.0
    %183 = vmatpush.msra.mxu0 0.0
    %184 = vmatpush.msra.mxu0 0.0
    %185 = vmatpush.msra.mxu0 0.0
    %186 = vmatpush.msra.mxu0 0.0
    %187 = vmatpush.msra.mxu0 0.0
    %188 = vmatpush.msra.mxu0 0.0
    %189 = vmatpush.msra.mxu0 %v160
    %190 = vmatpush.msra.mxu0 %v158
    %191 = vmatpush.msra.mxu0 %v156
    %192 = vmatpush.msra.mxu0 %v154
    %193 = vmatmul.f32.gmra.mxu0 %v166
    %v194 = vpop.f32.mrf.mxu0
    %v195 = vadd.f32 0.0, %v194
    %196 = vmatmul.f32.gmra.mxu0 %v169
    %v197 = vpop.f32.mrf.mxu0
    %v198 = vadd.f32 0.0, %v197
    %199 = vmatmul.f32.gmra.mxu0 %v172
    %v200 = vpop.f32.mrf.mxu0
    %v201 = vadd.f32 0.0, %v200
    %202 = vmatmul.f32.gmra.mxu0 %v175
    %v203 = vpop.f32.mrf.mxu0
    %v204 = vadd.f32 0.0, %v203
    %205 = vdwg.mxu0
    %v206 = vld [vmem:[%s4 + $0x10] sm:$0xff]
    %v207 = vld [vmem:[%s4 + $0x30] sm:$0xff]
    %v208 = vld [vmem:[%s4 + $0x50] sm:$0xff]
    %v209 = vld [vmem:[%s4 + $0x70] sm:$0xff]
    %210 = vmatpush.msra.mxu0 0.0
    %211 = vmatpush.msra.mxu0 0.0
    %212 = vmatpush.msra.mxu0 0.0
    %213 = vmatpush.msra.mxu0 0.0
    %214 = vmatpush.msra.mxu0 0.0
    %215 = vmatpush.msra.mxu0 0.0
    %216 = vmatpush.msra.mxu0 0.0
    %217 = vmatpush.msra.mxu0 0.0
    %218 = vmatpush.msra.mxu0 0.0
    %219 = vmatpush.msra.mxu0 0.0
    %220 = vmatpush.msra.mxu0 0.0
    %221 = vmatpush.msra.mxu0 0.0
    %222 = vmatpush.msra.mxu0 %v209
    %223 = vmatpush.msra.mxu0 %v208
    %224 = vmatpush.msra.mxu0 %v207
    %225 = vmatpush.msra.mxu0 %v206
    %226 = vmatmul.f32.gmra.mxu0 %v166
    %v227 = vpop.f32.mrf.mxu0
    %v228 = vadd.f32 0.0, %v227
    %229 = vmatmul.f32.gmra.mxu0 %v169
    %v230 = vpop.f32.mrf.mxu0
    %v231 = vadd.f32 0.0, %v230
    %232 = vmatmul.f32.gmra.mxu0 %v172
    %v233 = vpop.f32.mrf.mxu0
    %v234 = vadd.f32 0.0, %v233
    %235 = vmatmul.f32.gmra.mxu0 %v175
    %v236 = vpop.f32.mrf.mxu0
    %v237 = vadd.f32 0.0, %v236
    %238 = vdwg.mxu0
    %243 = vrot.lane.b32.xlu0 %v206, 96
    %v244 = vpop.permute.xlu0 %243
    %245 = vrot.lane.b32.xlu0 %v207, 96
    %v246 = vpop.permute.xlu0 %245
    %247 = vrot.lane.b32.xlu0 %v208, 96
    %v248 = vpop.permute.xlu0 %247
    %249 = vrot.lane.b32.xlu0 %v209, 96
    %v250 = vpop.permute.xlu0 %249
    %255 = vmatpush.msra.mxu0 0.0
    %256 = vmatpush.msra.mxu0 0.0
    %257 = vmatpush.msra.mxu0 0.0
    %258 = vmatpush.msra.mxu0 0.0
    %259 = vmatpush.msra.mxu0 0.0
    %260 = vmatpush.msra.mxu0 0.0
    %261 = vmatpush.msra.mxu0 0.0
    %262 = vmatpush.msra.mxu0 0.0
    %263 = vmatpush.msra.mxu0 0.0
    %264 = vmatpush.msra.mxu0 0.0
    %265 = vmatpush.msra.mxu0 0.0
    %266 = vmatpush.msra.mxu0 0.0
    %267 = vmatpush.msra.mxu0 %v250
    %268 = vmatpush.msra.mxu0 %v248
    %269 = vmatpush.msra.mxu0 %v246
    %270 = vmatpush.msra.mxu0 %v244
    %271 = vmatmul.f32.gmra.mxu0 %v166
    %v272 = vpop.f32.mrf.mxu0
    %v273 = vadd.f32 0.0, %v272
    %274 = vmatmul.f32.gmra.mxu0 %v169
    %v275 = vpop.f32.mrf.mxu0
    %v276 = vadd.f32 0.0, %v275
    %277 = vmatmul.f32.gmra.mxu0 %v172
    %v278 = vpop.f32.mrf.mxu0
    %v279 = vadd.f32 0.0, %v278
    %280 = vmatmul.f32.gmra.mxu0 %v175
    %v281 = vpop.f32.mrf.mxu0
    %v282 = vadd.f32 0.0, %v281
    %283 = vdwg.mxu0
    %v285 = vsel %vm111, %v195, 0
    %v288 = vsel %vm111, %v198, 0
    %v291 = vsel %vm111, %v201, 0
    %v294 = vsel %vm111, %v204, 0
    %v297 = vsel %vm111, %v228, 0
    %v300 = vsel %vm111, %v231, 0
    %v303 = vsel %vm111, %v234, 0
    %v306 = vsel %vm111, %v237, 0
    %308 = vmatpush.xpose.msra.mxu0 0.0
    %309 = vmatpush.xpose.msra.mxu0 0.0
    %310 = vmatpush.xpose.msra.mxu0 0.0
    %311 = vmatpush.xpose.msra.mxu0 0.0
    %312 = vmatpush.xpose.msra.mxu0 0.0
    %313 = vmatpush.xpose.msra.mxu0 0.0
    %314 = vmatpush.xpose.msra.mxu0 0.0
    %315 = vmatpush.xpose.msra.mxu0 0.0
    %316 = vmatpush.xpose.msra.mxu0 0.0
    %317 = vmatpush.xpose.msra.mxu0 0.0
    %318 = vmatpush.xpose.msra.mxu0 0.0
    %319 = vmatpush.xpose.msra.mxu0 0.0
    %320 = vmatpush.xpose.msra.mxu0 %v306
    %321 = vmatpush.xpose.msra.mxu0 %v303
    %322 = vmatpush.xpose.msra.mxu0 %v300
    %323 = vmatpush.xpose.msra.mxu0 %v297
    %324 = vmatmul.f32.gmra.mxu0 %v285
    %v325 = vpop.f32.mrf.mxu0
    %v326 = vadd.f32 0.0, %v325
    %327 = vmatmul.f32.gmra.mxu0 %v288
    %v328 = vpop.f32.mrf.mxu0
    %v329 = vadd.f32 0.0, %v328
    %330 = vmatmul.f32.gmra.mxu0 %v291
    %v331 = vpop.f32.mrf.mxu0
    %v332 = vadd.f32 0.0, %v331
    %333 = vmatmul.f32.gmra.mxu0 %v294
    %v334 = vpop.f32.mrf.mxu0
    %v335 = vadd.f32 0.0, %v334
    %336 = vdwg.mxu0
    %v337 = vmul.f32 %v326, 0.17677669
    %v338 = vmul.f32 %v329, 0.17677669
    %v339 = vmul.f32 %v332, 0.17677669
    %v340 = vmul.f32 %v335, 0.17677669
    %v341 = vld [vmem:[%s1] sm:$0xff]
    %v342 = vld [vmem:[%s1 + $0x8] sm:$0xff]
    %v343 = vld [vmem:[%s1 + $0x10] sm:$0xff]
    %v344 = vld [vmem:[%s1 + $0x18] sm:$0xff]
    %v345 = vadd.f32 %v337, %v341
    %v346 = vadd.f32 %v338, %v342
    %v347 = vadd.f32 %v339, %v343
    %v348 = vadd.f32 %v340, %v344
    %v349 = vsel %vm111, %v345, -inf
    %350 = vmax.xlane.f32.xlu0 %v349
    %v351 = vpop.xlane.xlu0 %350
    %v352 = vsel %vm111, %v346, -inf
    %353 = vmax.xlane.f32.xlu0 %v352
    %v354 = vpop.xlane.xlu0 %353
    %v355 = vsel %vm111, %v347, -inf
    %356 = vmax.xlane.f32.xlu0 %v355
    %v357 = vpop.xlane.xlu0 %356
    %v358 = vsel %vm111, %v348, -inf
    %359 = vmax.xlane.f32.xlu0 %v358
    %v360 = vpop.xlane.xlu0 %359
    %v361 = vsub.f32 %v345, %v351
    %v362 = vsub.f32 %v346, %v354
    %v363 = vsub.f32 %v347, %v357
    %v364 = vsub.f32 %v348, %v360
    %v365 = vmul.f32 %v361, 1.442695
    %v366 = vpow.pop %v365
    %v367 = vmul.f32 %v362, 1.442695
    %v368 = vpow.pop %v367
    %v369 = vmul.f32 %v363, 1.442695
    %v370 = vpow.pop %v369
    %v371 = vmul.f32 %v364, 1.442695
    %v372 = vpow.pop %v371
    %v373 = vsel %vm111, %v366, 0.0
    %374 = vadd.xlane.f32.xlu0 %v373
    %v375 = vpop.xlane.xlu0 %374
    %v376 = vsel %vm111, %v368, 0.0
    %377 = vadd.xlane.f32.xlu0 %v376
    %v378 = vpop.xlane.xlu0 %377
    %v379 = vsel %vm111, %v370, 0.0
    %380 = vadd.xlane.f32.xlu0 %v379
    %v381 = vpop.xlane.xlu0 %380
    %v382 = vsel %vm111, %v372, 0.0
    %383 = vadd.xlane.f32.xlu0 %v382
    %v384 = vpop.xlane.xlu0 %383
    %v385 = vrcp.pop %v375
    %v386 = vrcp.pop %v378
    %v387 = vrcp.pop %v381
    %v388 = vrcp.pop %v384
    %v389 = vmul.f32 %v366, %v385
    %v390 = vmul.f32 %v368, %v386
    %v391 = vmul.f32 %v370, %v387
    %v392 = vmul.f32 %v372, %v388
    %v394 = vsel %vm111, %v389, 0
    %v397 = vsel %vm111, %v390, 0
    %v400 = vsel %vm111, %v391, 0
    %v403 = vsel %vm111, %v392, 0
    %405 = vmatpush.msra.mxu0 0.0
    %406 = vmatpush.msra.mxu0 0.0
    %407 = vmatpush.msra.mxu0 0.0
    %408 = vmatpush.msra.mxu0 0.0
    %409 = vmatpush.msra.mxu0 0.0
    %410 = vmatpush.msra.mxu0 0.0
    %411 = vmatpush.msra.mxu0 0.0
    %412 = vmatpush.msra.mxu0 0.0
    %413 = vmatpush.msra.mxu0 0.0
    %414 = vmatpush.msra.mxu0 0.0
    %415 = vmatpush.msra.mxu0 0.0
    %416 = vmatpush.msra.mxu0 0.0
    %417 = vmatpush.msra.mxu0 %v282
    %418 = vmatpush.msra.mxu0 %v279
    %419 = vmatpush.msra.mxu0 %v276
    %420 = vmatpush.msra.mxu0 %v273
    %421 = vmatmul.f32.gmra.mxu0 %v394
    %v422 = vpop.f32.mrf.mxu0
    %v423 = vadd.f32 0.0, %v422
    %424 = vmatmul.f32.gmra.mxu0 %v397
    %v425 = vpop.f32.mrf.mxu0
    %v426 = vadd.f32 0.0, %v425
    %427 = vmatmul.f32.gmra.mxu0 %v400
    %v428 = vpop.f32.mrf.mxu0
    %v429 = vadd.f32 0.0, %v428
    %430 = vmatmul.f32.gmra.mxu0 %v403
    %v431 = vpop.f32.mrf.mxu0
    %v432 = vadd.f32 0.0, %v431
    %433 = vdwg.mxu0
    %434 = vrot.lane.b32.xlu0 %v206, 64
    %v435 = vpop.permute.xlu0 %434
    %436 = vrot.lane.b32.xlu0 %v207, 64
    %v437 = vpop.permute.xlu0 %436
    %438 = vrot.lane.b32.xlu0 %v208, 64
    %v439 = vpop.permute.xlu0 %438
    %440 = vrot.lane.b32.xlu0 %v209, 64
    %v441 = vpop.permute.xlu0 %440
    %v447 = vsel %vm111, %v423, 0
    %v450 = vsel %vm111, %v426, 0
    %v453 = vsel %vm111, %v429, 0
    %v456 = vsel %vm111, %v432, 0
    %458 = vmatpush.msra.mxu0 0.0
    %459 = vmatpush.msra.mxu0 0.0
    %460 = vmatpush.msra.mxu0 0.0
    %461 = vmatpush.msra.mxu0 0.0
    %462 = vmatpush.msra.mxu0 0.0
    %463 = vmatpush.msra.mxu0 0.0
    %464 = vmatpush.msra.mxu0 0.0
    %465 = vmatpush.msra.mxu0 0.0
    %466 = vmatpush.msra.mxu0 0.0
    %467 = vmatpush.msra.mxu0 0.0
    %468 = vmatpush.msra.mxu0 0.0
    %469 = vmatpush.msra.mxu0 0.0
    %470 = vmatpush.msra.mxu0 %v441
    %471 = vmatpush.msra.mxu0 %v439
    %472 = vmatpush.msra.mxu0 %v437
    %473 = vmatpush.msra.mxu0 %v435
    %474 = vmatmul.f32.gmra.mxu0 %v447
    %v475 = vpop.f32.mrf.mxu0
    %v476 = vadd.f32 0.0, %v475
    %477 = vmatmul.f32.gmra.mxu0 %v450
    %v478 = vpop.f32.mrf.mxu0
    %v479 = vadd.f32 0.0, %v478
    %480 = vmatmul.f32.gmra.mxu0 %v453
    %v481 = vpop.f32.mrf.mxu0
    %v482 = vadd.f32 0.0, %v481
    %483 = vmatmul.f32.gmra.mxu0 %v456
    %v484 = vpop.f32.mrf.mxu0
    %v485 = vadd.f32 0.0, %v484
    %486 = vdwg.mxu0
    %v487 = vadd.f32 %v142, %v476
    %v488 = vadd.f32 %v145, %v479
    %v489 = vadd.f32 %v148, %v482
    %v490 = vadd.f32 %v151, %v485
    %v491 = vld [vmem:[%s5 + $0x2] sm:$0x1]
    %v492 = vsel %vm111, %v487, 0.0
    %493 = vadd.xlane.f32.xlu0 %v492
    %v494 = vpop.xlane.xlu0 %493
    %v495 = vsel %vm111, %v488, 0.0
    %496 = vadd.xlane.f32.xlu0 %v495
    %v497 = vpop.xlane.xlu0 %496
    %v498 = vsel %vm111, %v489, 0.0
    %499 = vadd.xlane.f32.xlu0 %v498
    %v500 = vpop.xlane.xlu0 %499
    %v501 = vsel %vm111, %v490, 0.0
    %502 = vadd.xlane.f32.xlu0 %v501
    %v503 = vpop.xlane.xlu0 %502
    %v504 = vrcp.pop 32.0
    %v505 = vmul.f32 32.0, %v504
    %v506 = vsub.f32 1.0, %v505
    %v507 = vmul.f32 %v504, %v506
    %v508 = vadd.f32 %v504, %v507
    %vm509 = vweird.f32 %v504
    %v510 = vsel %vm509, %v504, %v508
    %v511 = vmul.f32 %v494, %v510
    %v512 = vmul.f32 %v497, %v510
    %v513 = vmul.f32 %v500, %v510
    %v514 = vmul.f32 %v503, %v510
    %v515 = vsub.f32 %v487, %v511
    %v516 = vsub.f32 %v488, %v512
    %v517 = vsub.f32 %v489, %v513
    %v518 = vsub.f32 %v490, %v514
    %v519 = vmul.f32 %v515, %v515
    %v520 = vmul.f32 %v516, %v516
    %v521 = vmul.f32 %v517, %v517
    %v522 = vmul.f32 %v518, %v518
    %v523 = vsel %vm111, %v519, 0.0
    %524 = vadd.xlane.f32.xlu0 %v523
    %v525 = vpop.xlane.xlu0 %524
    %v526 = vsel %vm111, %v520, 0.0
    %527 = vadd.xlane.f32.xlu0 %v526
    %v528 = vpop.xlane.xlu0 %527
    %v529 = vsel %vm111, %v521, 0.0
    %530 = vadd.xlane.f32.xlu0 %v529
    %v531 = vpop.xlane.xlu0 %530
    %v532 = vsel %vm111, %v522, 0.0
    %533 = vadd.xlane.f32.xlu0 %v532
    %v534 = vpop.xlane.xlu0 %533
    %v535 = vmul.f32 %v525, %v510
    %v536 = vmul.f32 %v528, %v510
    %v537 = vmul.f32 %v531, %v510
    %v538 = vmul.f32 %v534, %v510
    %v539 = vadd.f32 %v535, 1e-05
    %v540 = vadd.f32 %v536, 1e-05
    %v541 = vadd.f32 %v537, 1e-05
    %v542 = vadd.f32 %v538, 1e-05
    %v543 = vrsqrt.pop %v539
    %v544 = vmul.f32 %v543, %v539
    %v545 = vmul.f32 %v544, %v543
    %v546 = vmul.f32 0.5, %v545
    %v547 = vsub.f32 1.5, %v546
    %v548 = vmul.f32 %v543, %v547
    %vm549 = vweird.f32 %v539
    %vm550 = vweird.f32 %v543
    %vm551 = vmor %vm549, %vm550
    %v552 = vsel %vm551, %v543, %v548
    %v553 = vrsqrt.pop %v540
    %v554 = vmul.f32 %v553, %v540
    %v555 = vmul.f32 %v554, %v553
    %v556 = vmul.f32 0.5, %v555
    %v557 = vsub.f32 1.5, %v556
    %v558 = vmul.f32 %v553, %v557
    %vm559 = vweird.f32 %v540
    %vm560 = vweird.f32 %v553
    %vm561 = vmor %vm559, %vm560
    %v562 = vsel %vm561, %v553, %v558
    %v563 = vrsqrt.pop %v541
    %v564 = vmul.f32 %v563, %v541
    %v565 = vmul.f32 %v564, %v563
    %v566 = vmul.f32 0.5, %v565
    %v567 = vsub.f32 1.5, %v566
    %v568 = vmul.f32 %v563, %v567
    %vm569 = vweird.f32 %v541
    %vm570 = vweird.f32 %v563
    %vm571 = vmor %vm569, %vm570
    %v572 = vsel %vm571, %v563, %v568
    %v573 = vrsqrt.pop %v542
    %v574 = vmul.f32 %v573, %v542
    %v575 = vmul.f32 %v574, %v573
    %v576 = vmul.f32 0.5, %v575
    %v577 = vsub.f32 1.5, %v576
    %v578 = vmul.f32 %v573, %v577
    %vm579 = vweird.f32 %v542
    %vm580 = vweird.f32 %v573
    %vm581 = vmor %vm579, %vm580
    %v582 = vsel %vm581, %v573, %v578
    %v583 = vmul.f32 %v515, %v552
    %v584 = vmul.f32 %v516, %v562
    %v585 = vmul.f32 %v517, %v572
    %v586 = vmul.f32 %v518, %v582
    %v588 = vperm.slane %v491, 0
    %589 = vrot.lane.b32.xlu0 %v588, 96
    %v590 = vpop.permute.xlu0 %589
    %v592 = vmul.f32 %v583, %v590
    %v593 = vmul.f32 %v584, %v590
    %v594 = vmul.f32 %v585, %v590
    %v595 = vmul.f32 %v586, %v590
    %596 = vrot.lane.b32.xlu0 %v588, 64
    %v597 = vpop.permute.xlu0 %596
    %v599 = vadd.f32 %v592, %v597
    %v600 = vadd.f32 %v593, %v597
    %v601 = vadd.f32 %v594, %v597
    %v602 = vadd.f32 %v595, %v597
    %v605 = vsel %vm111, %v599, 0
    %v608 = vsel %vm111, %v600, 0
    %v611 = vsel %vm111, %v601, 0
    %v614 = vsel %vm111, %v602, 0
    %616 = vmatpush.msra.mxu0 0.0
    %617 = vmatpush.msra.mxu0 0.0
    %618 = vmatpush.msra.mxu0 0.0
    %619 = vmatpush.msra.mxu0 0.0
    %620 = vmatpush.msra.mxu0 0.0
    %621 = vmatpush.msra.mxu0 0.0
    %622 = vmatpush.msra.mxu0 0.0
    %623 = vmatpush.msra.mxu0 0.0
    %624 = vmatpush.msra.mxu0 0.0
    %625 = vmatpush.msra.mxu0 0.0
    %626 = vmatpush.msra.mxu0 0.0
    %627 = vmatpush.msra.mxu0 0.0
    %628 = vmatpush.msra.mxu0 %v91
    %629 = vmatpush.msra.mxu0 %v90
    %630 = vmatpush.msra.mxu0 %v89
    %631 = vmatpush.msra.mxu0 %v88
    %632 = vmatmul.f32.gmra.mxu0 %v605
    %v633 = vpop.f32.mrf.mxu0
    %v634 = vadd.f32 %v38, %v633
    %635 = vmatmul.f32.gmra.mxu0 %v608
    %v636 = vpop.f32.mrf.mxu0
    %v637 = vadd.f32 %v38, %v636
    %638 = vmatmul.f32.gmra.mxu0 %v611
    %v639 = vpop.f32.mrf.mxu0
    %v640 = vadd.f32 %v38, %v639
    %641 = vmatmul.f32.gmra.mxu0 %v614
    %v642 = vpop.f32.mrf.mxu0
    %v643 = vadd.f32 %v38, %v642
    %644 = vdwg.mxu0
    %v645 = vmax.f32 %v634, 0.0
    %v646 = vmax.f32 %v637, 0.0
    %v647 = vmax.f32 %v640, 0.0
    %v648 = vmax.f32 %v643, 0.0
    %658 = vrot.lane.b32.xlu0 %v28, 96
    %v659 = vpop.permute.xlu0 %658
    %660 = vrot.lane.b32.xlu0 %v29, 96
    %v661 = vpop.permute.xlu0 %660
    %662 = vrot.lane.b32.xlu0 %v30, 96
    %v663 = vpop.permute.xlu0 %662
    %664 = vrot.lane.b32.xlu0 %v31, 96
    %v665 = vpop.permute.xlu0 %664
    %666 = vrot.lane.b32.xlu0 %v32, 96
    %v667 = vpop.permute.xlu0 %666
    %668 = vrot.lane.b32.xlu0 %v33, 96
    %v669 = vpop.permute.xlu0 %668
    %670 = vrot.lane.b32.xlu0 %v34, 96
    %v671 = vpop.permute.xlu0 %670
    %672 = vrot.lane.b32.xlu0 %v35, 96
    %v673 = vpop.permute.xlu0 %672
    %v683 = vsel %vm42, %v645, 0
    %v686 = vsel %vm42, %v646, 0
    %v689 = vsel %vm42, %v647, 0
    %v692 = vsel %vm42, %v648, 0
    %694 = vmatpush.msra.mxu0 0.0
    %695 = vmatpush.msra.mxu0 0.0
    %696 = vmatpush.msra.mxu0 0.0
    %697 = vmatpush.msra.mxu0 0.0
    %698 = vmatpush.msra.mxu0 0.0
    %699 = vmatpush.msra.mxu0 0.0
    %700 = vmatpush.msra.mxu0 0.0
    %701 = vmatpush.msra.mxu0 0.0
    %702 = vmatpush.msra.mxu0 %v673
    %703 = vmatpush.msra.mxu0 %v671
    %704 = vmatpush.msra.mxu0 %v669
    %705 = vmatpush.msra.mxu0 %v667
    %706 = vmatpush.msra.mxu0 %v665
    %707 = vmatpush.msra.mxu0 %v663
    %708 = vmatpush.msra.mxu0 %v661
    %709 = vmatpush.msra.mxu0 %v659
    %710 = vmatmul.f32.gmra.mxu0 %v683
    %v711 = vpop.f32.mrf.mxu0
    %v712 = vadd.f32 %v588, %v711
    %713 = vmatmul.f32.gmra.mxu0 %v686
    %v714 = vpop.f32.mrf.mxu0
    %v715 = vadd.f32 %v588, %v714
    %716 = vmatmul.f32.gmra.mxu0 %v689
    %v717 = vpop.f32.mrf.mxu0
    %v718 = vadd.f32 %v588, %v717
    %719 = vmatmul.f32.gmra.mxu0 %v692
    %v720 = vpop.f32.mrf.mxu0
    %v721 = vadd.f32 %v588, %v720
    %722 = vdwg.mxu0
    %v723 = vadd.f32 %v599, %v712
    %v724 = vadd.f32 %v600, %v715
    %v725 = vadd.f32 %v601, %v718
    %v726 = vadd.f32 %v602, %v721
    %v727 = vld [vmem:[%s5 + $0x3] sm:$0x1]
    %v728 = vsel %vm111, %v723, 0.0
    %729 = vadd.xlane.f32.xlu0 %v728
    %v730 = vpop.xlane.xlu0 %729
    %v731 = vsel %vm111, %v724, 0.0
    %732 = vadd.xlane.f32.xlu0 %v731
    %v733 = vpop.xlane.xlu0 %732
    %v734 = vsel %vm111, %v725, 0.0
    %735 = vadd.xlane.f32.xlu0 %v734
    %v736 = vpop.xlane.xlu0 %735
    %v737 = vsel %vm111, %v726, 0.0
    %738 = vadd.xlane.f32.xlu0 %v737
    %v739 = vpop.xlane.xlu0 %738
    %v740 = vmul.f32 %v730, %v510
    %v741 = vmul.f32 %v733, %v510
    %v742 = vmul.f32 %v736, %v510
    %v743 = vmul.f32 %v739, %v510
    %v744 = vsub.f32 %v723, %v740
    %v745 = vsub.f32 %v724, %v741
    %v746 = vsub.f32 %v725, %v742
    %v747 = vsub.f32 %v726, %v743
    %v748 = vmul.f32 %v744, %v744
    %v749 = vmul.f32 %v745, %v745
    %v750 = vmul.f32 %v746, %v746
    %v751 = vmul.f32 %v747, %v747
    %v752 = vsel %vm111, %v748, 0.0
    %753 = vadd.xlane.f32.xlu0 %v752
    %v754 = vpop.xlane.xlu0 %753
    %v755 = vsel %vm111, %v749, 0.0
    %756 = vadd.xlane.f32.xlu0 %v755
    %v757 = vpop.xlane.xlu0 %756
    %v758 = vsel %vm111, %v750, 0.0
    %759 = vadd.xlane.f32.xlu0 %v758
    %v760 = vpop.xlane.xlu0 %759
    %v761 = vsel %vm111, %v751, 0.0
    %762 = vadd.xlane.f32.xlu0 %v761
    %v763 = vpop.xlane.xlu0 %762
    %v764 = vmul.f32 %v754, %v510
    %v765 = vmul.f32 %v757, %v510
    %v766 = vmul.f32 %v760, %v510
    %v767 = vmul.f32 %v763, %v510
    %v768 = vadd.f32 %v764, 1e-05
    %v769 = vadd.f32 %v765, 1e-05
    %v770 = vadd.f32 %v766, 1e-05
    %v771 = vadd.f32 %v767, 1e-05
    %v772 = vrsqrt.pop %v768
    %v773 = vmul.f32 %v772, %v768
    %v774 = vmul.f32 %v773, %v772
    %v775 = vmul.f32 0.5, %v774
    %v776 = vsub.f32 1.5, %v775
    %v777 = vmul.f32 %v772, %v776
    %vm778 = vweird.f32 %v768
    %vm779 = vweird.f32 %v772
    %vm780 = vmor %vm778, %vm779
    %v781 = vsel %vm780, %v772, %v777
    %v782 = vrsqrt.pop %v769
    %v783 = vmul.f32 %v782, %v769
    %v784 = vmul.f32 %v783, %v782
    %v785 = vmul.f32 0.5, %v784
    %v786 = vsub.f32 1.5, %v785
    %v787 = vmul.f32 %v782, %v786
    %vm788 = vweird.f32 %v769
    %vm789 = vweird.f32 %v782
    %vm790 = vmor %vm788, %vm789
    %v791 = vsel %vm790, %v782, %v787
    %v792 = vrsqrt.pop %v770
    %v793 = vmul.f32 %v792, %v770
    %v794 = vmul.f32 %v793, %v792
    %v795 = vmul.f32 0.5, %v794
    %v796 = vsub.f32 1.5, %v795
    %v797 = vmul.f32 %v792, %v796
    %vm798 = vweird.f32 %v770
    %vm799 = vweird.f32 %v792
    %vm800 = vmor %vm798, %vm799
    %v801 = vsel %vm800, %v792, %v797
    %v802 = vrsqrt.pop %v771
    %v803 = vmul.f32 %v802, %v771
    %v804 = vmul.f32 %v803, %v802
    %v805 = vmul.f32 0.5, %v804
    %v806 = vsub.f32 1.5, %v805
    %v807 = vmul.f32 %v802, %v806
    %vm808 = vweird.f32 %v771
    %vm809 = vweird.f32 %v802
    %vm810 = vmor %vm808, %vm809
    %v811 = vsel %vm810, %v802, %v807
    %v812 = vmul.f32 %v744, %v781
    %v813 = vmul.f32 %v745, %v791
    %v814 = vmul.f32 %v746, %v801
    %v815 = vmul.f32 %v747, %v811
    %816 = vrot.lane.b32.xlu0 %v588, 32
    %v817 = vpop.permute.xlu0 %816
    %v819 = vmul.f32 %v812, %v817
    %v820 = vmul.f32 %v813, %v817
    %v821 = vmul.f32 %v814, %v817
    %v822 = vmul.f32 %v815, %v817
    %v824 = vperm.slane %v727, 0
    %v826 = vadd.f32 %v819, %v824
    %v827 = vadd.f32 %v820, %v824
    %v828 = vadd.f32 %v821, %v824
    %v829 = vadd.f32 %v822, %v824
    %v830 = vld [vmem:[%s2] sm:$0x3]
    %v832 = vsel %vm111, %v830, 0
    %834 = vmatpush.msra.mxu0 0.0
    %835 = vmatpush.msra.mxu0 0.0
    %836 = vmatpush.msra.mxu0 0.0
    %837 = vmatpush.msra.mxu0 0.0
    %838 = vmatpush.msra.mxu0 0.0
    %839 = vmatpush.msra.mxu0 0.0
    %840 = vmatpush.msra.mxu0 0.0
    %841 = vmatpush.msra.mxu0 0.0
    %842 = vmatpush.msra.mxu0 0.0
    %843 = vmatpush.msra.mxu0 0.0
    %844 = vmatpush.msra.mxu0 0.0
    %845 = vmatpush.msra.mxu0 0.0
    %846 = vmatpush.msra.mxu0 %v829
    %847 = vmatpush.msra.mxu0 %v828
    %848 = vmatpush.msra.mxu0 %v827
    %849 = vmatpush.msra.mxu0 %v826
    %850 = vmatmul.f32.gmra.mxu0 %v832
    %v851 = vpop.f32.mrf.mxu0
    %v852 = vadd.f32 0.0, %v851
    %853 = vdwg.mxu0
    %854 = vrot.lane.b32.xlu0 %v206, 32
    %v855 = vpop.permute.xlu0 %854
    %856 = vrot.lane.b32.xlu0 %v207, 32
    %v857 = vpop.permute.xlu0 %856
    %858 = vrot.lane.b32.xlu0 %v208, 32
    %v859 = vpop.permute.xlu0 %858
    %860 = vrot.lane.b32.xlu0 %v209, 32
    %v861 = vpop.permute.xlu0 %860
    %866 = vrot.lane.b32.xlu0 %v824, 96
    %v867 = vpop.permute.xlu0 %866
    %v870 = vsel %vm111, %v852, 0
    %872 = vmatpush.msra.mxu0 0.0
    %873 = vmatpush.msra.mxu0 0.0
    %874 = vmatpush.msra.mxu0 0.0
    %875 = vmatpush.msra.mxu0 0.0
    %876 = vmatpush.msra.mxu0 0.0
    %877 = vmatpush.msra.mxu0 0.0
    %878 = vmatpush.msra.mxu0 0.0
    %879 = vmatpush.msra.mxu0 0.0
    %880 = vmatpush.msra.mxu0 0.0
    %881 = vmatpush.msra.mxu0 0.0
    %882 = vmatpush.msra.mxu0 0.0
    %883 = vmatpush.msra.mxu0 0.0
    %884 = vmatpush.msra.mxu0 %v861
    %885 = vmatpush.msra.mxu0 %v859
    %886 = vmatpush.msra.mxu0 %v857
    %887 = vmatpush.msra.mxu0 %v855
    %888 = vmatmul.f32.gmra.mxu0 %v870
    %v889 = vpop.f32.mrf.mxu0
    %v890 = vadd.f32 %v867, %v889
    %891 = vdwg.mxu0
    %v892 = vmax.f32 %v890, 0.0
    %v893 = vld [vmem:[%s4 + $0x18] sm:$0xff]
    %v894 = vld [vmem:[%s4 + $0x38] sm:$0xff]
    %v895 = vld [vmem:[%s4 + $0x58] sm:$0xff]
    %v896 = vld [vmem:[%s4 + $0x78] sm:$0xff]
    %897 = vrot.lane.b32.xlu0 %v824, 64
    %v898 = vpop.permute.xlu0 %897
    %v901 = vsel %vm111, %v892, 0
    %903 = vmatpush.msra.mxu0 0.0
    %904 = vmatpush.msra.mxu0 0.0
    %905 = vmatpush.msra.mxu0 0.0
    %906 = vmatpush.msra.mxu0 0.0
    %907 = vmatpush.msra.mxu0 0.0
    %908 = vmatpush.msra.mxu0 0.0
    %909 = vmatpush.msra.mxu0 0.0
    %910 = vmatpush.msra.mxu0 0.0
    %911 = vmatpush.msra.mxu0 0.0
    %912 = vmatpush.msra.mxu0 0.0
    %913 = vmatpush.msra.mxu0 0.0
    %914 = vmatpush.msra.mxu0 0.0
    %915 = vmatpush.msra.mxu0 %v896
    %916 = vmatpush.msra.mxu0 %v895
    %917 = vmatpush.msra.mxu0 %v894
    %918 = vmatpush.msra.mxu0 %v893
    %919 = vmatmul.f32.gmra.mxu0 %v901
    %v920 = vpop.f32.mrf.mxu0
    %v921 = vadd.f32 %v898, %v920
    %922 = vdwg.mxu0
    %v923 = vld [vmem:[%s4] sm:$0xff]
    %v924 = vld [vmem:[%s4 + $0x20] sm:$0xff]
    %v925 = vld [vmem:[%s4 + $0x40] sm:$0xff]
    %v926 = vld [vmem:[%s4 + $0x60] sm:$0xff]
    %v927 = vld [vmem:[%s5] sm:$0x1]
    %v929 = vperm.slane %v927, 0
    %v932 = vsel %vm111, %v921, 0
    %934 = vmatpush.msra.mxu0 0.0
    %935 = vmatpush.msra.mxu0 0.0
    %936 = vmatpush.msra.mxu0 0.0
    %937 = vmatpush.msra.mxu0 0.0
    %938 = vmatpush.msra.mxu0 0.0
    %939 = vmatpush.msra.mxu0 0.0
    %940 = vmatpush.msra.mxu0 0.0
    %941 = vmatpush.msra.mxu0 0.0
    %942 = vmatpush.msra.mxu0 0.0
    %943 = vmatpush.msra.mxu0 0.0
    %944 = vmatpush.msra.mxu0 0.0
    %945 = vmatpush.msra.mxu0 0.0
    %946 = vmatpush.msra.mxu0 %v926
    %947 = vmatpush.msra.mxu0 %v925
    %948 = vmatpush.msra.mxu0 %v924
    %949 = vmatpush.msra.mxu0 %v923
    %950 = vmatmul.f32.gmra.mxu0 %v932
    %v951 = vpop.f32.mrf.mxu0
    %v952 = vadd.f32 %v929, %v951
    %953 = vdwg.mxu0
    %vm954 = vcmask 1041408
    %v955 = vsel %vm954, %v952, -inf
    %956 = vmax.xlane.f32.xlu0 %v955
    %v957 = vpop.xlane.xlu0 %956
    %v958 = vsub.f32 %v952, %v957
    %v959 = vmul.f32 %v958, 1.442695
    %v960 = vpow.pop %v959
    %v961 = vsel %vm954, %v960, 0.0
    %962 = vadd.xlane.f32.xlu0 %v961
    %v963 = vpop.xlane.xlu0 %962
    %v964 = vrcp.pop %v963
    %v965 = vmul.f32 %v963, %v964
    %v966 = vsub.f32 1.0, %v965
    %v967 = vmul.f32 %v964, %v966
    %v968 = vadd.f32 %v964, %v967
    %vm969 = vweird.f32 %v963
    %vm970 = vweird.f32 %v964
    %vm971 = vmor %vm969, %vm970
    %v972 = vsel %vm971, %v964, %v968
    %v973 = vand.u32 2147483647, %v963
    %vm974 = vcmp.eq.f32.partialorder %v973, 8.507059e+37
    %v975 = vand.u32 %v963, 2147483648
    %v976 = vor.u32 1.1754944e-38, %v975
    %v977 = vsel %vm974, %v976, %v972
    %v978 = vmul.f32 %v960, %v977
    %979 = vst [vmem:[#allocation2] sm:$0x3] %v978
    // Predicated region
    $region26: #{forward_model.1} parent=1 // pred_check
      _
    $region27: #{forward_model.1} parent=1 // pred_check_branch
      %981 = sbr.rel (0) target = $region29
    $region28: #{forward_model.1} parent=1 // pred_region
      %983 = vsyncadd [#allocation3], 0
      %s985 = sshll.u32 [#allocation2], 4
      %s986 = int_to_ptr.vmem [resolvable:$true] %s985
      %s987 = sshll.u32 %s6, 4
      %s988 = int_to_ptr.hbm [resolvable:$true] %s987
      %990 = dma.vmem_to_hbm [thread:$0]  %s986, 32, %s988, [#allocation3]
    $region29: #{forward_model.1} parent=1 // pred_fallthru
      _
    // Predicated region
    $region30: #{forward_model.1} parent=1 // pred_check
      _
    $region31: #{forward_model.1} parent=1 // pred_check_branch
      %992 = sbr.rel (0) target = $region33
    $region32: #{forward_model.1} parent=1 // pred_region
      %994 = dma.done [#allocation3], 32
    $region33: #{forward_model.1} parent=1 // pred_fallthru
      _
    %995 = vsyncpa [#allocation3], 1

</llo_original>
